<compile_context>
chip_gen: v7x
topology: tpu7x:2x2x1
jax: 0.10.0
libtpu: 0.0.40
codegen_flags: <defaults>
</compile_context>

<pallas_src>
import functools
import math

import jax
import jax.numpy as jnp
from jax.experimental import pallas as pl
from jax.experimental.pallas import tpu as pltpu


_INV_SQRT2 = 0.7071067811865476
_MIB = 1024 * 1024

# pl.reciprocal(approx=True) gives ~1e-3 relative deviation vs exact division in
# the softmax denominator; acceptable for inference, set False for exactness.
_APPROX_RECIPROCAL = True


def _gelu(x):
    # BERT's exact (erf) GELU, computed in f32.
    # (On v5e a tanh-approx GELU is a possible EUP-friendly speed/precision tradeoff.)
    return 0.5 * x * (1.0 + jax.lax.erf(x * _INV_SQRT2))


def _round_up(x, m):
    return ((x + m - 1) // m) * m


def _pad2d(a, rows, cols):
    r, c = a.shape
    if r == rows and c == cols:
        return a
    return jnp.pad(a, ((0, rows - r), (0, cols - c)))


def _pick_tile(dim, cap, align=128):
    """Largest tile <= cap that divides dim (multiple of `align`); else cap (pad)."""
    if dim <= cap:
        return dim
    d = (cap // align) * align
    while d >= align:
        if dim % d == 0:
            return d
        d -= align
    return cap  # fallback: caller pads


_VMEM_CAP_CACHE = None


def _vmem_capacity_bytes():
    global _VMEM_CAP_CACHE
    if _VMEM_CAP_CACHE is None:
        try:
            _VMEM_CAP_CACHE = int(pltpu.get_tpu_info().vmem_capacity_bytes)
        except Exception:
            _VMEM_CAP_CACHE = 128 * _MIB
    return _VMEM_CAP_CACHE


def _vmem_limit(est_bytes):
    """Explicit scoped-VMEM limit: 2x headroom over the estimated footprint,
    floored at 32 MiB and capped at 3/4 of physical VMEM (v7x-safe)."""
    cap = (3 * _vmem_capacity_bytes()) // 4
    return int(min(max(2 * int(est_bytes), 32 * _MIB), cap))


def _fused_tm_cap():
    # v7x has 64 MiB VMEM per TC -> smaller row tiles for the fused kernels.
    return 128 if _vmem_capacity_bytes() <= 80 * _MIB else 256


# --------------------------- K-tiled linear (+bias, +GELU) ---------------------------

def _matmul_kernel(x_ref, w_ref, b_ref, o_ref, acc_ref, *, activation):
    @pl.when(pl.program_id(2) == 0)
    def _():
        acc_ref[...] = jnp.zeros_like(acc_ref)

    acc_ref[...] += jnp.dot(x_ref[...], w_ref[...],
                            preferred_element_type=jnp.float32)

    @pl.when(pl.program_id(2) == pl.num_programs(2) - 1)
    def _():
        y = acc_ref[...] + b_ref[...]          # bias in f32
        if activation == "gelu":
            y = _gelu(y)
        o_ref[...] = y.astype(o_ref.dtype)


def linear(x, w, b, activation="none", out_dtype=jnp.bfloat16,
           tm_cap=512, tn_cap=256, tk_cap=512):
    """x: [M,K], w: [K,N], b: [N] -> [M,N].  bf16 operands, f32 accumulation.
    Tiles are chosen as divisors of M/N/K when possible (no K padding for 768)."""
    M, K = x.shape
    N = w.shape[1]
    tm = _pick_tile(M, tm_cap)
    tn = _pick_tile(N, tn_cap)
    tk = _pick_tile(K, tk_cap)
    Mp, Np, Kp = _round_up(M, tm), _round_up(N, tn), _round_up(K, tk)

    xp = _pad2d(x.astype(jnp.bfloat16), Mp, Kp)
    wp = _pad2d(w.astype(jnp.bfloat16), Kp, Np)
    bp = _pad2d(b.reshape(1, N).astype(jnp.float32), 1, Np)

    est = (2 * (tm * tk * 2 + tk * tn * 2 + tn * 4)
           + 2 * (tm * tn * 2) + tm * tn * 4)
    out = pl.pallas_call(
        functools.partial(_matmul_kernel, activation=activation),
        out_shape=jax.ShapeDtypeStruct((Mp, Np), out_dtype),
        grid=(Mp // tm, Np // tn, Kp // tk),
        in_specs=[
            pl.BlockSpec((tm, tk), lambda i, j, k: (i, k)),
            pl.BlockSpec((tk, tn), lambda i, j, k: (k, j)),
            pl.BlockSpec((1, tn), lambda i, j, k: (0, j)),
        ],
        out_specs=pl.BlockSpec((tm, tn), lambda i, j, k: (i, j)),
        scratch_shapes=[pltpu.VMEM((tm, tn), jnp.float32)],
        compiler_params=pltpu.CompilerParams(
            dimension_semantics=("parallel", "parallel", "arbitrary"),
            vmem_limit_bytes=_vmem_limit(est)),
    )(xp, wp, bp)
    return out[:M, :N]


# -------------------------------- LayerNorm (embeddings) --------------------------------

def _ln_kernel(x_ref, g_ref, b_ref, o_ref, *, eps):
    x = x_ref[...].astype(jnp.float32)
    mu = jnp.mean(x, axis=-1, keepdims=True)
    var = jnp.mean((x - mu) * (x - mu), axis=-1, keepdims=True)
    y = (x - mu) * jax.lax.rsqrt(var + eps)
    o_ref[...] = (y * g_ref[...] + b_ref[...]).astype(o_ref.dtype)


def layernorm(x, gamma, beta, eps=1e-12, out_dtype=jnp.bfloat16, tm_cap=None):
    M, H = x.shape
    if tm_cap is None:
        tm_cap = _fused_tm_cap()
    tm = _pick_tile(M, tm_cap)
    Mp = _round_up(M, tm)
    xp = _pad2d(x, Mp, H)
    est = 2 * (tm * H * 2 + 2 * H * 4) + 2 * (tm * H * 2)
    out = pl.pallas_call(
        functools.partial(_ln_kernel, eps=eps),
        out_shape=jax.ShapeDtypeStruct((Mp, H), out_dtype),
        grid=(Mp // tm,),
        in_specs=[
            pl.BlockSpec((tm, H), lambda i: (i, 0)),
            pl.BlockSpec((1, H), lambda i: (0, 0)),
            pl.BlockSpec((1, H), lambda i: (0, 0)),
        ],
        out_specs=pl.BlockSpec((tm, H), lambda i: (i, 0)),
        compiler_params=pltpu.CompilerParams(
            dimension_semantics=("parallel",),
            vmem_limit_bytes=_vmem_limit(est)),
    )(xp, gamma.reshape(1, H).astype(jnp.float32),
      beta.reshape(1, H).astype(jnp.float32))
    return out[:M]


# ------------------- attention-output projection + residual + LayerNorm -------------------

def _proj_res_ln_kernel(x_ref, w_ref, b_ref, r_ref, g_ref, bln_ref, o_ref, *, eps):
    y = jnp.dot(x_ref[...], w_ref[...], preferred_element_type=jnp.float32) + b_ref[...]
    z = y + r_ref[...].astype(jnp.float32)
    mu = jnp.mean(z, axis=-1, keepdims=True)
    var = jnp.mean((z - mu) * (z - mu), axis=-1, keepdims=True)
    out = (z - mu) * jax.lax.rsqrt(var + eps) * g_ref[...] + bln_ref[...]
    o_ref[...] = out.astype(o_ref.dtype)


def linear_residual_layernorm(x, w, b, residual, gamma, beta, eps=1e-12, tm_cap=None):
    """LayerNorm(residual + x @ w + b).  Row-tiled; full [K,N] weight (H x H) in VMEM."""
    M, K = x.shape
    N = w.shape[1]
    if tm_cap is None:
        tm_cap = _fused_tm_cap()
    tm = _pick_tile(M, tm_cap)
    Mp = _round_up(M, tm)
    xp = _pad2d(x.astype(jnp.bfloat16), Mp, K)
    rp = _pad2d(residual.astype(jnp.bfloat16), Mp, N)
    est = (2 * (tm * K * 2) + 2 * (K * N * 2) + 2 * (tm * N * 2)
           + 2 * (3 * N * 4) + 2 * (tm * N * 2) + tm * N * 4)
    out = pl.pallas_call(
        functools.partial(_proj_res_ln_kernel, eps=eps),
        out_shape=jax.ShapeDtypeStruct((Mp, N), jnp.bfloat16),
        grid=(Mp // tm,),
        in_specs=[
            pl.BlockSpec((tm, K), lambda i: (i, 0)),
            pl.BlockSpec((K, N), lambda i: (0, 0)),
            pl.BlockSpec((1, N), lambda i: (0, 0)),
            pl.BlockSpec((tm, N), lambda i: (i, 0)),
            pl.BlockSpec((1, N), lambda i: (0, 0)),
            pl.BlockSpec((1, N), lambda i: (0, 0)),
        ],
        out_specs=pl.BlockSpec((tm, N), lambda i: (i, 0)),
        compiler_params=pltpu.CompilerParams(
            dimension_semantics=("parallel",),
            vmem_limit_bytes=_vmem_limit(est)),
    )(xp, w.astype(jnp.bfloat16), b.reshape(1, N).astype(jnp.float32), rp,
      gamma.reshape(1, N).astype(jnp.float32), beta.reshape(1, N).astype(jnp.float32))
    return out[:M]


# --------------- fused FFN (GELU) + residual + LayerNorm, I-axis tiled ---------------

def _ffn_kernel(x_ref, w1_ref, b1_ref, w2_ref, b2_ref, g_ref, bln_ref, o_ref,
                acc_ref, *, eps):
    @pl.when(pl.program_id(1) == 0)
    def _():
        acc_ref[...] = jnp.zeros_like(acc_ref)

    x = x_ref[...]                                                      # bf16 [tm, H]
    t = jnp.dot(x, w1_ref[...], preferred_element_type=jnp.float32) + b1_ref[...]
    t = _gelu(t)                                                        # f32 [tm, tI]
    acc_ref[...] += jnp.dot(t.astype(jnp.bfloat16), w2_ref[...],
                            preferred_element_type=jnp.float32)

    @pl.when(pl.program_id(1) == pl.num_programs(1) - 1)
    def _():
        z = acc_ref[...] + b2_ref[...] + x.astype(jnp.float32)          # residual add
        mu = jnp.mean(z, axis=-1, keepdims=True)
        var = jnp.mean((z - mu) * (z - mu), axis=-1, keepdims=True)
        out = (z - mu) * jax.lax.rsqrt(var + eps) * g_ref[...] + bln_ref[...]
        o_ref[...] = out.astype(o_ref.dtype)


def ffn_residual_layernorm(x, w1, b1, w2, b2, gamma, beta, eps=1e-12,
                           tm_cap=None, ti_cap=512):
    """LayerNorm(x + GELU(x@w1+b1)@w2+b2).  The intermediate dimension is tiled
    (grid axis 'arbitrary'); only [H, tI] / [tI, H] weight chunks and an f32
    [tm, H] accumulator are resident — the 4H intermediate never touches HBM."""
    M, H = x.shape
    I = w1.shape[1]
    if tm_cap is None:
        tm_cap = _fused_tm_cap()
    tm = _pick_tile(M, tm_cap)
    tI = _pick_tile(I, ti_cap)
    Mp = _round_up(M, tm)
    Ip = _round_up(I, tI)

    xp = _pad2d(x.astype(jnp.bfloat16), Mp, H)
    w1p = _pad2d(w1.astype(jnp.bfloat16), H, Ip)
    b1p = _pad2d(b1.reshape(1, I).astype(jnp.float32), 1, Ip)
    w2p = _pad2d(w2.astype(jnp.bfloat16), Ip, H)

    est = (2 * (tm * H * 2) + 2 * (H * tI * 2) + 2 * (tI * H * 2)
           + 2 * ((tI + 3 * H) * 4) + 2 * (tm * H * 2)
           + tm * H * 4 + tm * tI * 4)
    out = pl.pallas_call(
        functools.partial(_ffn_kernel, eps=eps),
        out_shape=jax.ShapeDtypeStruct((Mp, H), jnp.bfloat16),
        grid=(Mp // tm, Ip // tI),
        in_specs=[
            pl.BlockSpec((tm, H), lambda i, l: (i, 0)),    # x resident across I axis
            pl.BlockSpec((H, tI), lambda i, l: (0, l)),    # w1 chunk
            pl.BlockSpec((1, tI), lambda i, l: (0, l)),    # b1 chunk
            pl.BlockSpec((tI, H), lambda i, l: (l, 0)),    # w2 chunk
            pl.BlockSpec((1, H), lambda i, l: (0, 0)),
            pl.BlockSpec((1, H), lambda i, l: (0, 0)),
            pl.BlockSpec((1, H), lambda i, l: (0, 0)),
        ],
        out_specs=pl.BlockSpec((tm, H), lambda i, l: (i, 0)),
        scratch_shapes=[pltpu.VMEM((tm, H), jnp.float32)],
        compiler_params=pltpu.CompilerParams(
            dimension_semantics=("parallel", "arbitrary"),
            vmem_limit_bytes=_vmem_limit(est)),
    )(xp, w1p, b1p, w2p, b2.reshape(1, H).astype(jnp.float32),
      gamma.reshape(1, H).astype(jnp.float32), beta.reshape(1, H).astype(jnp.float32))
    return out[:M]


# ------------------------- self-attention (one head per grid step) -------------------------

def _attn_kernel(qkv_ref, m_ref, o_ref, *, scale):
    # qkv_ref: [3, S, dh] bf16 (this batch/head), m_ref: [1, S] f32, o_ref: [S, dh]
    q = (qkv_ref[0] * scale).astype(jnp.bfloat16)     # fold 1/sqrt(dh) into bf16 q
    k = qkv_ref[1]
    v = qkv_ref[2]
    neg = (1.0 - m_ref[...]) * (-10000.0)             # [1, S] additive mask (HF BERT)
    # contract dh of both operands -> no explicit K transpose
    s = jax.lax.dot_general(q, k, (((1,), (1,)), ((), ())),
                            preferred_element_type=jnp.float32)
    s = s + neg
    s = s - jnp.max(s, axis=-1, keepdims=True)
    p = jnp.exp(s)
    p = p * pl.reciprocal(jnp.sum(p, axis=-1, keepdims=True),
                          approx=_APPROX_RECIPROCAL)
    o_ref[...] = jnp.dot(p.astype(jnp.bfloat16), v,
                         preferred_element_type=jnp.float32).astype(o_ref.dtype)


def attention(qkv5, maskf, *, head_dim):
    """qkv5: [3, B, nh, S, dh] bf16 (packed Q|K|V per head), maskf: [B, 1, S] f32.
    Grid is (B, nh) — heads live in the grid, both axes 'parallel' (megacore)."""
    _, B, nh, S, dh = qkv5.shape
    scale = 1.0 / math.sqrt(head_dim)
    est = 2 * (3 * S * dh * 2 + S * 4) + 2 * (S * dh * 2) + 3 * S * S * 4
    return pl.pallas_call(
        functools.partial(_attn_kernel, scale=scale),
        out_shape=jax.ShapeDtypeStruct((B, nh, S, dh), jnp.bfloat16),
        grid=(B, nh),
        in_specs=[
            pl.BlockSpec((3, None, None, S, dh), lambda b, h: (0, b, h, 0, 0)),
            pl.BlockSpec((None, 1, S), lambda b, h: (b, 0, 0)),
        ],
        out_specs=pl.BlockSpec((None, None, S, dh), lambda b, h: (b, h, 0, 0)),
        compiler_params=pltpu.CompilerParams(
            dimension_semantics=("parallel", "parallel"),
            vmem_limit_bytes=_vmem_limit(est)),
    )(qkv5.astype(jnp.bfloat16), maskf.astype(jnp.float32))


# ------------------------- model params (synthetic, deterministic) -------------------------

def init_params(key, *, vocab_size, hidden, num_layers, num_heads,
                intermediate, max_pos, type_vocab, num_labels):
    ks = iter(jax.random.split(key, 8 + num_layers * 8))

    def nrm(shape):
        return (0.02 * jax.random.normal(next(ks), shape)).astype(jnp.float32)

    params = {
        "word_emb": nrm((vocab_size, hidden)),
        "pos_emb": nrm((max_pos, hidden)),
        "type_emb": nrm((type_vocab, hidden)),
        "emb_ln_g": jnp.ones((hidden,), jnp.float32),
        "emb_ln_b": jnp.zeros((hidden,), jnp.float32),
        "layers": [],
        # classifier head: nn.Linear(hidden, num_labels)
        "cls_w": nrm((hidden, num_labels)),
        "cls_b": jnp.zeros((num_labels,), jnp.float32),
    }
    for _ in range(num_layers):
        params["layers"].append({
            # fused QKV projection: wq|wk|wv -> [H, 3H]
            "wqkv": nrm((hidden, 3 * hidden)),
            "bqkv": jnp.zeros((3 * hidden,), jnp.float32),
            "wo": nrm((hidden, hidden)), "bo": jnp.zeros((hidden,), jnp.float32),
            "ln1_g": jnp.ones((hidden,), jnp.float32),
            "ln1_b": jnp.zeros((hidden,), jnp.float32),
            "w1": nrm((hidden, intermediate)), "b1": jnp.zeros((intermediate,), jnp.float32),
            "w2": nrm((intermediate, hidden)), "b2": jnp.zeros((hidden,), jnp.float32),
            "ln2_g": jnp.ones((hidden,), jnp.float32),
            "ln2_b": jnp.zeros((hidden,), jnp.float32),
        })
    return params


# ------------------------------------ forward pass ------------------------------------

def bert_token_classification_forward(params, token_ids, text_attention_mask,
                                      *, max_length, num_heads):
    """Mirrors BertTokenClassification.forward with labels=None:
       logits = classifier(bert(token_ids, attention_mask).last_hidden_state)."""
    token_ids = token_ids.reshape(-1, max_length)
    text_attention_mask = text_attention_mask.reshape(-1, max_length).astype(jnp.float32)
    B, S = token_ids.shape
    H = params["word_emb"].shape[1]
    dh = H // num_heads

    # Embeddings (gather is XLA glue); cast the sum to bf16 before the LayerNorm
    # pallas_call (halves the HBM read; statistics are f32 inside the kernel).
    emb = (jnp.take(params["word_emb"], token_ids, axis=0)
           + params["pos_emb"][:S][None, :, :]
           + params["type_emb"][0][None, None, :])                           # f32 [B, S, H]
    h2d = layernorm(emb.astype(jnp.bfloat16).reshape(B * S, H),
                    params["emb_ln_g"], params["emb_ln_b"])                  # bf16 [B*S, H]

    maskf = text_attention_mask.reshape(B, 1, S)

    for layer in params["layers"]:
        # fused QKV projection (one K-tiled matmul)
        qkv = linear(h2d, layer["wqkv"], layer["bqkv"])                      # bf16 [B*S, 3H]
        # [B*S, 3H] -> [3, B, nh, S, dh]: one XLA transpose feeding head-in-grid attention
        qkv5 = jnp.transpose(qkv.reshape(B, S, 3, num_heads, dh), (2, 0, 3, 1, 4))
        ctx = attention(qkv5, maskf, head_dim=dh)                            # bf16 [B, nh, S, dh]
        ctx2d = jnp.transpose(ctx, (0, 2, 1, 3)).reshape(B * S, H)
        # output projection + residual + LayerNorm fused
        h2d = linear_residual_layernorm(ctx2d, layer["wo"], layer["bo"], h2d,
                                        layer["ln1_g"], layer["ln1_b"])
        # fused FFN (GELU) + residual + LayerNorm, I-tiled (4H intermediate never hits HBM)
        h2d = ffn_residual_layernorm(h2d, layer["w1"], layer["b1"],
                                     layer["w2"], layer["b2"],
                                     layer["ln2_g"], layer["ln2_b"])

    # Classifier head (dropout is identity in the eval / labels=None path).
    # Pad the output dim to a lane-dense 128 and slice back (avoids masked stores).
    num_labels = params["cls_w"].shape[1]
    n_pad = max(128, _round_up(num_labels, 128))
    cls_w = _pad2d(params["cls_w"], H, n_pad)
    cls_b = jnp.pad(params["cls_b"], (0, n_pad - num_labels))
    logits = linear(h2d, cls_w, cls_b, out_dtype=jnp.float32)[:, :num_labels]
    return logits.reshape(B, S, num_labels)

# TODO(synk): labels-path (masked CrossEntropyLoss over active tokens) uses a
# data-dependent boolean gather (logits[active_loss]); not implemented here.


# ---------------------------------------- main ----------------------------------------

if __name__ == "__main__":
    B = 2
    MAX_LENGTH = 8          # max_length
    HIDDEN = 32             # bert.config.hidden_size (small synthetic)
    NUM_HEADS = 2
    NUM_LAYERS = 2
    INTERMEDIATE = 64
    VOCAB = 50
    MAX_POS = 16
    TYPE_VOCAB = 2
    NUM_LABELS = 5

    key = jax.random.PRNGKey(0)
    k_params, k_ids = jax.random.split(key)

    params = init_params(
        k_params, vocab_size=VOCAB, hidden=HIDDEN, num_layers=NUM_LAYERS,
        num_heads=NUM_HEADS, intermediate=INTERMEDIATE, max_pos=MAX_POS,
        type_vocab=TYPE_VOCAB, num_labels=NUM_LABELS)

    token_ids = jax.random.randint(k_ids, (B, MAX_LENGTH), 0, VOCAB, dtype=jnp.int32)
    text_attention_mask = jnp.array(
        [[1, 1, 1, 1, 1, 1, 1, 1],
         [1, 1, 1, 1, 1, 1, 0, 0]], dtype=jnp.float32)

    logits = bert_token_classification_forward(
        params, token_ids, text_attention_mask,
        max_length=MAX_LENGTH, num_heads=NUM_HEADS)
    logits = jax.block_until_ready(logits)

    assert logits.shape == (B, MAX_LENGTH, NUM_LABELS)
    assert logits.dtype == jnp.float32
    assert bool(jnp.all(jnp.isfinite(logits)))
    print("KERNEL_OK")
</pallas_src>

<mosaic_0001>
module attributes {stable_mosaic.version = 11 : i64} {
  func.func @_ln_kernel(%arg0: i32, %arg1: memref<16x32xbf16, #tpu.memory_space<vmem>>, %arg2: memref<1x32xf32, #tpu.memory_space<vmem>>, %arg3: memref<1x32xf32, #tpu.memory_space<vmem>>, %arg4: memref<16x32xbf16, #tpu.memory_space<vmem>>) attributes {dimension_semantics = [#tpu.dimension_semantics<parallel>], iteration_bounds = array<i64: 1>, scalar_prefetch = 0 : i64, scratch_operands = 0 : i64, tpu.core_type = #tpu.core_type<tc>, window_params = [{transform_indices = @transform_0, window_bounds = array<i64: 16, 32>}, {pipeline_mode = #tpu.pipeline_mode<synchronous>, transform_indices = @transform_1, window_bounds = array<i64: 1, 32>}, {pipeline_mode = #tpu.pipeline_mode<synchronous>, transform_indices = @transform_2, window_bounds = array<i64: 1, 32>}, {transform_indices = @transform_3, window_bounds = array<i64: 16, 32>}]} {
    %c0 = arith.constant 0 : index
    %c0_0 = arith.constant 0 : index
    %0 = vector.load %arg1[%c0, %c0_0] : memref<16x32xbf16, #tpu.memory_space<vmem>>, vector<16x32xbf16>
    %1 = arith.extf %0 : vector<16x32xbf16> to vector<16x32xf32>
    %cst = arith.constant dense<0.000000e+00> : vector<16xf32>
    %2 = vector.multi_reduction <add>, %1, %cst [1] : vector<16x32xf32> to vector<16xf32>
    %3 = vector.shape_cast %2 : vector<16xf32> to vector<16x1xf32>
    %cst_1 = arith.constant 3.200000e+01 : f32
    %4 = vector.broadcast %cst_1 : f32 to vector<16x1xf32>
    %5 = arith.divf %3, %4 : vector<16x1xf32>
    %6 = vector.broadcast %5 : vector<16x1xf32> to vector<16x32xf32>
    %7 = arith.subf %1, %6 : vector<16x32xf32>
    %8 = vector.broadcast %5 : vector<16x1xf32> to vector<16x32xf32>
    %9 = arith.subf %1, %8 : vector<16x32xf32>
    %10 = arith.mulf %7, %9 : vector<16x32xf32>
    %cst_2 = arith.constant dense<0.000000e+00> : vector<16xf32>
    %11 = vector.multi_reduction <add>, %10, %cst_2 [1] : vector<16x32xf32> to vector<16xf32>
    %12 = vector.shape_cast %11 : vector<16xf32> to vector<16x1xf32>
    %cst_3 = arith.constant 3.200000e+01 : f32
    %13 = vector.broadcast %cst_3 : f32 to vector<16x1xf32>
    %14 = arith.divf %12, %13 : vector<16x1xf32>
    %15 = vector.broadcast %5 : vector<16x1xf32> to vector<16x32xf32>
    %16 = arith.subf %1, %15 : vector<16x32xf32>
    %cst_4 = arith.constant 9.99999996E-13 : f32
    %17 = vector.broadcast %cst_4 : f32 to vector<16x1xf32>
    %18 = arith.addf %14, %17 : vector<16x1xf32>
    %19 = math.rsqrt %18 : vector<16x1xf32>
    %20 = vector.broadcast %19 : vector<16x1xf32> to vector<16x32xf32>
    %21 = arith.mulf %16, %20 : vector<16x32xf32>
    %c0_5 = arith.constant 0 : index
    %c0_6 = arith.constant 0 : index
    %22 = vector.load %arg2[%c0_5, %c0_6] : memref<1x32xf32, #tpu.memory_space<vmem>>, vector<1x32xf32>
    %23 = vector.broadcast %22 : vector<1x32xf32> to vector<16x32xf32>
    %24 = arith.mulf %21, %23 : vector<16x32xf32>
    %c0_7 = arith.constant 0 : index
    %c0_8 = arith.constant 0 : index
    %25 = vector.load %arg3[%c0_7, %c0_8] : memref<1x32xf32, #tpu.memory_space<vmem>>, vector<1x32xf32>
    %26 = vector.broadcast %25 : vector<1x32xf32> to vector<16x32xf32>
    %27 = arith.addf %24, %26 : vector<16x32xf32>
    %28 = arith.truncf %27 : vector<16x32xf32> to vector<16x32xbf16>
    %c0_9 = arith.constant 0 : index
    %c0_10 = arith.constant 0 : index
    %29 = vector.load %arg4[%c0_9, %c0_10] : memref<16x32xbf16, #tpu.memory_space<vmem>>, vector<16x32xbf16>
    tpu.vector_store %arg4[%c0_9, %c0_10], %28 {strides = array<i32>} : memref<16x32xbf16, #tpu.memory_space<vmem>>, vector<16x32xbf16>,
    return
  }
  func.func @transform_0(%arg0: i32) -> (i32, i32) {
    %c0_i32 = arith.constant 0 : i32
    %c0_i32_0 = arith.constant 0 : i32
    return %arg0, %c0_i32 : i32, i32
  }
  func.func @transform_1(%arg0: i32) -> (i32, i32) {
    %c0_i32 = arith.constant 0 : i32
    %c0_i32_0 = arith.constant 0 : i32
    %c0_i32_1 = arith.constant 0 : i32
    return %c0_i32, %c0_i32_0 : i32, i32
  }
  func.func @transform_2(%arg0: i32) -> (i32, i32) {
    %c0_i32 = arith.constant 0 : i32
    %c0_i32_0 = arith.constant 0 : i32
    %c0_i32_1 = arith.constant 0 : i32
    return %c0_i32, %c0_i32_0 : i32, i32
  }
  func.func @transform_3(%arg0: i32) -> (i32, i32) {
    %c0_i32 = arith.constant 0 : i32
    %c0_i32_0 = arith.constant 0 : i32
    return %arg0, %c0_i32 : i32, i32
  }
}

</mosaic_0001>

<llo_original>
// kernel: tpu_custom_call.1
$region0: #{tpu_custom_call.1}
  #allocation0 [shape = 'u32[]', space=smem, size = 0x4, offset = 0x4, fixed_abs, tag = 'smem constant byte address 0x4 - core index']
  #allocation1 [shape = 'u32[144,128]{1,0:T(1,128)}', space=vmem, size = 0x12000, scoped, tag = 'internal scratch']
  %s0 = inlined_call_operand.hbm [shape: bf16[16,32], index: 0, kind: input, shape index: {}]
  %s1 = inlined_call_operand.vmem [shape: f32[1,32], index: 1, kind: input, shape index: {}]
  %s2 = inlined_call_operand.vmem [shape: f32[1,32], index: 2, kind: input, shape index: {}]
  %s3 = inlined_call_operand.hbm [shape: bf16[16,32], index: 3, kind: output, shape index: {}]
  %s4 = sld [smem:[#allocation0]]
  $region26: #{tpu_custom_call.1} parent=0
    _
  %s6 = ssub.s32 1, %s4
  %s7 = scalar_select 0, %s6, %s4
  $region1: #{tpu_custom_call.1} parent=0
    #allocation2 [shape = 'u8[4096]{0}', space=vmem, size = 0x1000, scoped, tag = 'input window, operand 0, single buffered']
    #allocation3 [shape = 's32[1]{0}', space=sflag, size = 0x4, scoped, tag = 'scoped memory for tpu_custom_call.1']
    #allocation4 [shape = 's32[1]{0}', space=sflag, size = 0x4, scoped, tag = 'scoped memory for tpu_custom_call.1']
    #allocation5 [shape = 'u8[4096]{0}', space=vmem, size = 0x1000, scoped, tag = 'output window, operand 0, single buffered']
    %8 = vsyncpa [#allocation3], 0
    %9 = vsyncpa [#allocation4], 0
    // Predicated region
    $region2: #{tpu_custom_call.1} parent=1 // pred_check
      _
    $region3: #{tpu_custom_call.1} parent=1 // pred_check_branch
      %11 = sbr.rel (0) target = $region5
    $region4: #{tpu_custom_call.1} parent=1 // pred_region
      %s13 = ssub.s32 128, 128
      %14 = vsyncadd [#allocation3], %s13
      %s15 = sshll.u32 [#allocation2], 4
      %s16 = int_to_ptr.vmem [resolvable:$true] %s15
      %21 = dma.hbm_to_vmem [thread:$0]  %s0, 128, %s16, [#allocation3], 64, 64, 4
    $region5: #{tpu_custom_call.1} parent=1 // pred_fallthru
      _
    // Predicated region
    $region6: #{tpu_custom_call.1} parent=1 // pred_check
      _
    $region7: #{tpu_custom_call.1} parent=1 // pred_check_branch
      %23 = sbr.rel (0) target = $region9
    $region8: #{tpu_custom_call.1} parent=1 // pred_region
      _
    $region9: #{tpu_custom_call.1} parent=1 // pred_fallthru
      _
    // Predicated region
    $region10: #{tpu_custom_call.1} parent=1 // pred_check
      _
    $region11: #{tpu_custom_call.1} parent=1 // pred_check_branch
      %25 = sbr.rel (0) target = $region13
    $region12: #{tpu_custom_call.1} parent=1 // pred_region
      _
    $region13: #{tpu_custom_call.1} parent=1 // pred_fallthru
      _
    // Predicated region
    $region14: #{tpu_custom_call.1} parent=1 // pred_check
      _
    $region15: #{tpu_custom_call.1} parent=1 // pred_check_branch
      %27 = sbr.rel (0) target = $region17
    $region16: #{tpu_custom_call.1} parent=1 // pred_region
      %28 = dma.done [#allocation3], 128
    $region17: #{tpu_custom_call.1} parent=1 // pred_fallthru
      _
    %v29 = vld [vmem:[#allocation2] sm:$0xf]
    %v30 = vld [vmem:[#allocation2 + $0x4] sm:$0xf]
    %v31 = vunpack.c.l.bf16 %v29
    %v32 = vunpack.c.l.bf16 %v30
    %vm33 = vcmask 261120
    %v34 = vsel %vm33, %v31, 0.0
    %35 = vadd.xlane.f32.xlu0 %v34
    %v36 = vpop.xlane.xlu0 %35
    %v37 = vsel %vm33, %v32, 0.0
    %38 = vadd.xlane.f32.xlu0 %v37
    %v39 = vpop.xlane.xlu0 %38
    %v40 = vrcp.pop 32.0
    %v41 = vmul.f32 %v36, %v40
    %v42 = vmul.f32 %v39, %v40
    %v43 = vsub.f32 %v31, %v41
    %v44 = vsub.f32 %v32, %v42
    %v45 = vmul.f32 %v43, %v43
    %v46 = vmul.f32 %v44, %v44
    %v47 = vsel %vm33, %v45, 0.0
    %48 = vadd.xlane.f32.xlu0 %v47
    %v49 = vpop.xlane.xlu0 %48
    %v50 = vsel %vm33, %v46, 0.0
    %51 = vadd.xlane.f32.xlu0 %v50
    %v52 = vpop.xlane.xlu0 %51
    %v53 = vmul.f32 %v49, %v40
    %v54 = vmul.f32 %v52, %v40
    %v55 = vadd.f32 %v53, 1e-12
    %v56 = vadd.f32 %v54, 1e-12
    %v57 = vrsqrt.pop %v55
    %v58 = vrsqrt.pop %v56
    %v59 = vmul.f32 %v43, %v57
    %v60 = vmul.f32 %v44, %v58
    %v61 = vld [vmem:[%s1] sm:$0x1]
    %v63 = vlaneseq
    %v64 = vshrl.u32 %v63, 7
    %v65 = vsub.s32 0, %v64
    %v66 = vrot.slane %v61, %v65
    %v68 = vmul.f32 %v59, %v66
    %v69 = vmul.f32 %v60, %v66
    %v70 = vld [vmem:[%s2] sm:$0x1]
    %v72 = vlaneseq
    %v73 = vshrl.u32 %v72, 7
    %v74 = vsub.s32 0, %v73
    %v75 = vrot.slane %v70, %v74
    %v77 = vadd.f32 %v68, %v75
    %v78 = vadd.f32 %v69, %v75
    %v79 = vpack.c.bf16 %v78, %v77
    %v81 = vunpack.c.l.b16 %v79
    %v82 = vunpack.c.h.b16 %v79
    %v83 = vpack.c.b16 %v81, %v81
    %v84 = vpack.c.b16 %v82, %v82
    %vm87 = vcmask 257024
    %88 = vst.msk [vmem:[#allocation5] sm:$0xf] %vm87, %v83
    %89 = vst.msk [vmem:[#allocation5 + $0x4] sm:$0xf] %vm87, %v84
    // Predicated region
    $region18: #{tpu_custom_call.1} parent=1 // pred_check
      _
    $region19: #{tpu_custom_call.1} parent=1 // pred_check_branch
      %91 = sbr.rel (0) target = $region21
    $region20: #{tpu_custom_call.1} parent=1 // pred_region
      %s93 = ssub.s32 128, 128
      %94 = vsyncadd [#allocation4], %s93
      %s95 = sshll.u32 [#allocation5], 4
      %s96 = int_to_ptr.vmem [resolvable:$true] %s95
      %101 = dma.vmem_to_hbm [thread:$0]  %s96, 128, %s3, [#allocation4], 64, 64, 4
    $region21: #{tpu_custom_call.1} parent=1 // pred_fallthru
      _
    // Predicated region
    $region22: #{tpu_custom_call.1} parent=1 // pred_check
      _
    $region23: #{tpu_custom_call.1} parent=1 // pred_check_branch
      %103 = sbr.rel (0) target = $region25
    $region24: #{tpu_custom_call.1} parent=1 // pred_region
      %104 = dma.done [#allocation4], 128
    $region25: #{tpu_custom_call.1} parent=1 // pred_fallthru
      _
    %105 = vsyncpa [#allocation3], 1
    %106 = vsyncpa [#allocation4], 1

</llo_original>
